<compile_context>
chip_gen: v6e
topology: v6e:2x2x1
jax: 0.10.0
libtpu: 0.0.40
codegen_flags: <defaults>
</compile_context>

<pallas_src>
import jax
import jax.numpy as jnp
from jax.experimental import pallas as pl
from jax.experimental.pallas import tpu as pltpu

EPS = 1e-6


def _round_up(x, m):
    return ((x + m - 1) // m) * m


def alpha_loss_kernel(w_ref, spw_ref, p_ref, spp_ref, ve_ref, pe_ref):
    # Lane-dense value error: (1, TN), full-width unmasked store.
    w = w_ref[...].astype(jnp.float32)
    spw = spw_ref[...].astype(jnp.float32)
    ve_ref[...] = (spw - w) ** 2

    # Policy cross-entropy over the (padded, lane-dense) policy axis.
    # Upcast to f32 BEFORE +EPS / log so bf16 inputs don't lose the eps.
    p = p_ref[...].astype(jnp.float32)          # (TN, P_pad)
    spp = spp_ref[...].astype(jnp.float32)      # (TN, P_pad)
    # Negation hoisted out of the (TN, P_pad) product onto the (TN, 1) result.
    pe_ref[...] = -jnp.sum(spp * jnp.log(p + EPS), axis=1, keepdims=True)


def alpha_loss(winner, self_play_winner, probas, self_play_probas, *, tn=1024):
    """Returns (total_error, value_error, policy_error) like the PyTorch module."""
    n, p_dim = probas.shape

    # Tile sizes: TN multiple of 128 (lane-dense ve blocks + sublane rule for pe),
    # capped by the batch so tiny batches stay a single block.
    TN = min(tn, _round_up(n, 128))
    n_pad = _round_up(n, TN)
    p_pad = _round_up(p_dim, 128)

    # Lane-dense (1, N) layout for the value path; zero pads -> ve pad rows == 0.
    w2 = jnp.pad(winner.reshape(1, n), ((0, 0), (0, n_pad - n)))
    spw2 = jnp.pad(self_play_winner.reshape(1, n), ((0, 0), (0, n_pad - n)))
    # Policy pads: probas -> 1.0 (log stays benign), self_play_probas -> 0.0,
    # so every padded row/lane contributes exactly 0 to policy_error.
    pr = jnp.pad(probas, ((0, n_pad - n), (0, p_pad - p_dim)), constant_values=1.0)
    spp = jnp.pad(self_play_probas, ((0, n_pad - n), (0, p_pad - p_dim)),
                  constant_values=0.0)

    grid = (n_pad // TN,)
    ve_pad, pe_pad = pl.pallas_call(
        alpha_loss_kernel,
        out_shape=(
            jax.ShapeDtypeStruct((1, n_pad), jnp.float32),   # value_error, lane-dense
            jax.ShapeDtypeStruct((n_pad, 1), jnp.float32),   # policy_error
        ),
        grid=grid,
        in_specs=[
            pl.BlockSpec((1, TN), lambda i: (0, i)),         # winner
            pl.BlockSpec((1, TN), lambda i: (0, i)),         # self_play_winner
            pl.BlockSpec((TN, p_pad), lambda i: (i, 0)),     # probas (dominant stream)
            pl.BlockSpec((TN, p_pad), lambda i: (i, 0)),     # self_play_probas
        ],
        out_specs=(
            pl.BlockSpec((1, TN), lambda i: (0, i)),
            pl.BlockSpec((TN, 1), lambda i: (i, 0)),
        ),
        compiler_params=pltpu.CompilerParams(
            # No cross-block dependency (scalar mean finished outside), so the
            # N axis can shard across v7x's two TensorCores.
            dimension_semantics=("parallel",),
        ),
    )(w2, spw2, pr, spp)

    ve = ve_pad[0, :n]
    pe = pe_pad[:n, 0]
    # Padded rows contribute exactly 0, so summing the padded outputs is exact.
    total = (jnp.sum(ve_pad) + jnp.sum(pe_pad)) * (1.0 / n)
    # TODO(synk): if DMA is still exposed at the chosen TN on a given chip, try
    # pipeline_mode=pl.Buffered(3) on the probas/self_play_probas in_specs.
    return total, ve, pe


# ------------------------- pure-JAX reference ---------------------------------
def alpha_loss_ref(winner, self_play_winner, probas, self_play_probas):
    ve = (self_play_winner.reshape(-1) - winner) ** 2
    pe = jnp.sum(-self_play_probas * jnp.log(probas + EPS), axis=1)
    return jnp.mean(ve + pe), ve, pe


# ------------------------------ main -------------------------------------------
if __name__ == "__main__":
    N, P = 8, 65  # batch of 8 positions, 8x8 board moves + pass

    key = jax.random.PRNGKey(0)
    k1, k2, k3, k4 = jax.random.split(key, 4)
    winner = jax.random.uniform(k1, (N,), jnp.float32, -1.0, 1.0)
    self_play_winner = jax.random.uniform(k2, (N, 1), jnp.float32, -1.0, 1.0)
    probas = jax.nn.softmax(jax.random.normal(k3, (N, P), jnp.float32), axis=1)
    self_play_probas = jax.nn.softmax(jax.random.normal(k4, (N, P), jnp.float32), axis=1)

    fwd = jax.jit(alpha_loss)
    total, ve, pe = fwd(winner, self_play_winner, probas, self_play_probas)
    jax.block_until_ready((total, ve, pe))

    rt, rve, rpe = alpha_loss_ref(winner, self_play_winner, probas, self_play_probas)
    assert total.shape == () and ve.shape == (N,) and pe.shape == (N,)
    assert jnp.allclose(ve, rve, atol=1e-5, rtol=1e-5)
    assert jnp.allclose(pe, rpe, atol=1e-5, rtol=1e-5)
    assert jnp.allclose(total, rt, atol=1e-5, rtol=1e-5)
    print("KERNEL_OK")
</pallas_src>

<mosaic_0001>
module attributes {stable_mosaic.version = 11 : i64} {
  func.func @alpha_loss_kernel(%arg0: i32, %arg1: memref<1x128xf32, #tpu.memory_space<vmem>>, %arg2: memref<1x128xf32, #tpu.memory_space<vmem>>, %arg3: memref<128x128xf32, #tpu.memory_space<vmem>>, %arg4: memref<128x128xf32, #tpu.memory_space<vmem>>, %arg5: memref<1x128xf32, #tpu.memory_space<vmem>>, %arg6: memref<128x1xf32, #tpu.memory_space<vmem>>) attributes {dimension_semantics = [#tpu.dimension_semantics<parallel>], iteration_bounds = array<i64: 1>, scalar_prefetch = 0 : i64, scratch_operands = 0 : i64, tpu.core_type = #tpu.core_type<tc>, window_params = [{transform_indices = @transform_0, window_bounds = array<i64: 1, 128>}, {transform_indices = @transform_1, window_bounds = array<i64: 1, 128>}, {transform_indices = @transform_2, window_bounds = array<i64: 128, 128>}, {transform_indices = @transform_3, window_bounds = array<i64: 128, 128>}, {transform_indices = @transform_4, window_bounds = array<i64: 1, 128>}, {transform_indices = @transform_5, window_bounds = array<i64: 128, 1>}]} {
    %c0 = arith.constant 0 : index
    %c0_0 = arith.constant 0 : index
    %0 = vector.load %arg1[%c0, %c0_0] : memref<1x128xf32, #tpu.memory_space<vmem>>, vector<1x128xf32>
    %c0_1 = arith.constant 0 : index
    %c0_2 = arith.constant 0 : index
    %1 = vector.load %arg2[%c0_1, %c0_2] : memref<1x128xf32, #tpu.memory_space<vmem>>, vector<1x128xf32>
    %2 = arith.subf %1, %0 : vector<1x128xf32>
    %3 = arith.mulf %2, %2 : vector<1x128xf32>
    %c0_3 = arith.constant 0 : index
    %c0_4 = arith.constant 0 : index
    %4 = vector.load %arg5[%c0_3, %c0_4] : memref<1x128xf32, #tpu.memory_space<vmem>>, vector<1x128xf32>
    tpu.vector_store %arg5[%c0_3, %c0_4], %3 {strides = array<i32>} : memref<1x128xf32, #tpu.memory_space<vmem>>, vector<1x128xf32>,
    %c0_5 = arith.constant 0 : index
    %c0_6 = arith.constant 0 : index
    %5 = vector.load %arg3[%c0_5, %c0_6] : memref<128x128xf32, #tpu.memory_space<vmem>>, vector<128x128xf32>
    %c0_7 = arith.constant 0 : index
    %c0_8 = arith.constant 0 : index
    %6 = vector.load %arg4[%c0_7, %c0_8] : memref<128x128xf32, #tpu.memory_space<vmem>>, vector<128x128xf32>
    %cst = arith.constant 9.99999997E-7 : f32
    %7 = vector.broadcast %cst : f32 to vector<128x128xf32>
    %8 = arith.addf %5, %7 : vector<128x128xf32>
    %9 = math.log %8 : vector<128x128xf32>
    %10 = arith.mulf %6, %9 : vector<128x128xf32>
    %cst_9 = arith.constant dense<0.000000e+00> : vector<128xf32>
    %11 = vector.multi_reduction <add>, %10, %cst_9 [1] : vector<128x128xf32> to vector<128xf32>
    %12 = vector.shape_cast %11 : vector<128xf32> to vector<128x1xf32>
    %cst_10 = arith.constant 0.000000e+00 : f32
    %13 = vector.broadcast %cst_10 : f32 to vector<128x1xf32>
    %14 = arith.subf %13, %12 : vector<128x1xf32>
    %c0_11 = arith.constant 0 : index
    %c0_12 = arith.constant 0 : index
    %15 = vector.load %arg6[%c0_11, %c0_12] : memref<128x1xf32, #tpu.memory_space<vmem>>, vector<128x1xf32>
    tpu.vector_store %arg6[%c0_11, %c0_12], %14 {strides = array<i32>} : memref<128x1xf32, #tpu.memory_space<vmem>>, vector<128x1xf32>,
    return
  }
  func.func @transform_0(%arg0: i32) -> (i32, i32) {
    %c0_i32 = arith.constant 0 : i32
    %c0_i32_0 = arith.constant 0 : i32
    return %c0_i32, %arg0 : i32, i32
  }
  func.func @transform_1(%arg0: i32) -> (i32, i32) {
    %c0_i32 = arith.constant 0 : i32
    %c0_i32_0 = arith.constant 0 : i32
    return %c0_i32, %arg0 : i32, i32
  }
  func.func @transform_2(%arg0: i32) -> (i32, i32) {
    %c0_i32 = arith.constant 0 : i32
    %c0_i32_0 = arith.constant 0 : i32
    return %arg0, %c0_i32 : i32, i32
  }
  func.func @transform_3(%arg0: i32) -> (i32, i32) {
    %c0_i32 = arith.constant 0 : i32
    %c0_i32_0 = arith.constant 0 : i32
    return %arg0, %c0_i32 : i32, i32
  }
  func.func @transform_4(%arg0: i32) -> (i32, i32) {
    %c0_i32 = arith.constant 0 : i32
    %c0_i32_0 = arith.constant 0 : i32
    return %c0_i32, %arg0 : i32, i32
  }
  func.func @transform_5(%arg0: i32) -> (i32, i32) {
    %c0_i32 = arith.constant 0 : i32
    %c0_i32_0 = arith.constant 0 : i32
    return %arg0, %c0_i32 : i32, i32
  }
}

</mosaic_0001>

<llo_original>
// kernel: alpha_loss.1
$region0: #{alpha_loss.1}
  #allocation0 [shape = 'u32[]', space=smem, size = 0x4, offset = 0x4, fixed_abs, tag = 'smem constant byte address 0x4 - core index']
  #allocation1 [shape = 'u32[144,128]{1,0:T(1,128)}', space=vmem, size = 0x12000, scoped, tag = 'internal scratch']
  %s0 = inlined_call_operand.vmem [shape: f32[1,128], index: 0, kind: input, shape index: {}]
  %s1 = inlined_call_operand.vmem [shape: f32[1,128], index: 1, kind: input, shape index: {}]
  %s2 = inlined_call_operand.vmem [shape: f32[128,128], index: 2, kind: input, shape index: {}]
  %s3 = inlined_call_operand.vmem [shape: f32[128,128], index: 3, kind: input, shape index: {}]
  %s4 = inlined_call_operand.vmem [shape: f32[1,128], index: 4, kind: output, shape index: {0}]
  %s5 = inlined_call_operand.vmem [shape: f32[128,1], index: 5, kind: output, shape index: {1}]
  %6 = xla_tuple %s4, %s5
  %s7 = sld [smem:[#allocation0]]
  $region34: #{alpha_loss.1} parent=0
    _
  %s9 = ssub.s32 1, %s7
  %s10 = scalar_select 0, %s9, %s7
  // Predicated region
  $region2: #{alpha_loss.1} parent=0 // pred_check
    _
  $region3: #{alpha_loss.1} parent=0 // pred_check_branch
    %12 = sbr.rel (0) target = $region5
  $region4: #{alpha_loss.1} parent=0 // pred_region
    _
  $region5: #{alpha_loss.1} parent=0 // pred_fallthru
    _
  // Predicated region
  $region6: #{alpha_loss.1} parent=0 // pred_check
    _
  $region7: #{alpha_loss.1} parent=0 // pred_check_branch
    %14 = sbr.rel (0) target = $region9
  $region8: #{alpha_loss.1} parent=0 // pred_region
    _
  $region9: #{alpha_loss.1} parent=0 // pred_fallthru
    _
  // Predicated region
  $region10: #{alpha_loss.1} parent=0 // pred_check
    _
  $region11: #{alpha_loss.1} parent=0 // pred_check_branch
    %16 = sbr.rel (0) target = $region13
  $region12: #{alpha_loss.1} parent=0 // pred_region
    _
  $region13: #{alpha_loss.1} parent=0 // pred_fallthru
    _
  // Predicated region
  $region14: #{alpha_loss.1} parent=0 // pred_check
    _
  $region15: #{alpha_loss.1} parent=0 // pred_check_branch
    %18 = sbr.rel (0) target = $region17
  $region16: #{alpha_loss.1} parent=0 // pred_region
    _
  $region17: #{alpha_loss.1} parent=0 // pred_fallthru
    _
  %v19 = vld [vmem:[%s0] sm:$0x1]
  %v20 = vld [vmem:[%s1] sm:$0x1]
  %v21 = vsub.f32 %v20, %v19
  %v22 = vmul.f32 %v21, %v21
  %23 = vst [vmem:[%s4] sm:$0x1] %v22
  %v24 = vld [vmem:[%s2] sm:$0xff]
  %v25 = vld [vmem:[%s2 + $0x8] sm:$0xff]
  %v26 = vld [vmem:[%s2 + $0x10] sm:$0xff]
  %v27 = vld [vmem:[%s2 + $0x18] sm:$0xff]
  %v28 = vld [vmem:[%s2 + $0x20] sm:$0xff]
  %v29 = vld [vmem:[%s2 + $0x28] sm:$0xff]
  %v30 = vld [vmem:[%s2 + $0x30] sm:$0xff]
  %v31 = vld [vmem:[%s2 + $0x38] sm:$0xff]
  %v32 = vld [vmem:[%s2 + $0x40] sm:$0xff]
  %v33 = vld [vmem:[%s2 + $0x48] sm:$0xff]
  %v34 = vld [vmem:[%s2 + $0x50] sm:$0xff]
  %v35 = vld [vmem:[%s2 + $0x58] sm:$0xff]
  %v36 = vld [vmem:[%s2 + $0x60] sm:$0xff]
  %v37 = vld [vmem:[%s2 + $0x68] sm:$0xff]
  %v38 = vld [vmem:[%s2 + $0x70] sm:$0xff]
  %v39 = vld [vmem:[%s2 + $0x78] sm:$0xff]
  %v40 = vld [vmem:[%s3] sm:$0xff]
  %v41 = vld [vmem:[%s3 + $0x8] sm:$0xff]
  %v42 = vld [vmem:[%s3 + $0x10] sm:$0xff]
  %v43 = vld [vmem:[%s3 + $0x18] sm:$0xff]
  %v44 = vld [vmem:[%s3 + $0x20] sm:$0xff]
  %v45 = vld [vmem:[%s3 + $0x28] sm:$0xff]
  %v46 = vld [vmem:[%s3 + $0x30] sm:$0xff]
  %v47 = vld [vmem:[%s3 + $0x38] sm:$0xff]
  %v48 = vld [vmem:[%s3 + $0x40] sm:$0xff]
  %v49 = vld [vmem:[%s3 + $0x48] sm:$0xff]
  %v50 = vld [vmem:[%s3 + $0x50] sm:$0xff]
  %v51 = vld [vmem:[%s3 + $0x58] sm:$0xff]
  %v52 = vld [vmem:[%s3 + $0x60] sm:$0xff]
  %v53 = vld [vmem:[%s3 + $0x68] sm:$0xff]
  %v54 = vld [vmem:[%s3 + $0x70] sm:$0xff]
  %v55 = vld [vmem:[%s3 + $0x78] sm:$0xff]
  %v56 = vadd.f32 %v24, 1e-06
  %v57 = vadd.f32 %v25, 1e-06
  %v58 = vadd.f32 %v26, 1e-06
  %v59 = vadd.f32 %v27, 1e-06
  %v60 = vadd.f32 %v28, 1e-06
  %v61 = vadd.f32 %v29, 1e-06
  %v62 = vadd.f32 %v30, 1e-06
  %v63 = vadd.f32 %v31, 1e-06
  %v64 = vadd.f32 %v32, 1e-06
  %v65 = vadd.f32 %v33, 1e-06
  %v66 = vadd.f32 %v34, 1e-06
  %v67 = vadd.f32 %v35, 1e-06
  %v68 = vadd.f32 %v36, 1e-06
  %v69 = vadd.f32 %v37, 1e-06
  %v70 = vadd.f32 %v38, 1e-06
  %v71 = vadd.f32 %v39, 1e-06
  %v72 = vlog2.pop %v56
  %v73 = vmul.f32 %v72, 0.6931472
  %v74 = vlog2.pop %v57
  %v75 = vmul.f32 %v74, 0.6931472
  %v76 = vlog2.pop %v58
  %v77 = vmul.f32 %v76, 0.6931472
  %v78 = vlog2.pop %v59
  %v79 = vmul.f32 %v78, 0.6931472
  %v80 = vlog2.pop %v60
  %v81 = vmul.f32 %v80, 0.6931472
  %v82 = vlog2.pop %v61
  %v83 = vmul.f32 %v82, 0.6931472
  %v84 = vlog2.pop %v62
  %v85 = vmul.f32 %v84, 0.6931472
  %v86 = vlog2.pop %v63
  %v87 = vmul.f32 %v86, 0.6931472
  %v88 = vlog2.pop %v64
  %v89 = vmul.f32 %v88, 0.6931472
  %v90 = vlog2.pop %v65
  %v91 = vmul.f32 %v90, 0.6931472
  %v92 = vlog2.pop %v66
  %v93 = vmul.f32 %v92, 0.6931472
  %v94 = vlog2.pop %v67
  %v95 = vmul.f32 %v94, 0.6931472
  %v96 = vlog2.pop %v68
  %v97 = vmul.f32 %v96, 0.6931472
  %v98 = vlog2.pop %v69
  %v99 = vmul.f32 %v98, 0.6931472
  %v100 = vlog2.pop %v70
  %v101 = vmul.f32 %v100, 0.6931472
  %v102 = vlog2.pop %v71
  %v103 = vmul.f32 %v102, 0.6931472
  %v104 = vmul.f32 %v40, %v73
  %v105 = vmul.f32 %v41, %v75
  %v106 = vmul.f32 %v42, %v77
  %v107 = vmul.f32 %v43, %v79
  %v108 = vmul.f32 %v44, %v81
  %v109 = vmul.f32 %v45, %v83
  %v110 = vmul.f32 %v46, %v85
  %v111 = vmul.f32 %v47, %v87
  %v112 = vmul.f32 %v48, %v89
  %v113 = vmul.f32 %v49, %v91
  %v114 = vmul.f32 %v50, %v93
  %v115 = vmul.f32 %v51, %v95
  %v116 = vmul.f32 %v52, %v97
  %v117 = vmul.f32 %v53, %v99
  %v118 = vmul.f32 %v54, %v101
  %v119 = vmul.f32 %v55, %v103
  %120 = vadd.xlane.f32.xlu0 %v104
  %v121 = vpop.xlane.xlu0 %120
  %122 = vadd.xlane.f32.xlu0 %v105
  %v123 = vpop.xlane.xlu0 %122
  %124 = vadd.xlane.f32.xlu0 %v106
  %v125 = vpop.xlane.xlu0 %124
  %126 = vadd.xlane.f32.xlu0 %v107
  %v127 = vpop.xlane.xlu0 %126
  %128 = vadd.xlane.f32.xlu0 %v108
  %v129 = vpop.xlane.xlu0 %128
  %130 = vadd.xlane.f32.xlu0 %v109
  %v131 = vpop.xlane.xlu0 %130
  %132 = vadd.xlane.f32.xlu0 %v110
  %v133 = vpop.xlane.xlu0 %132
  %134 = vadd.xlane.f32.xlu0 %v111
  %v135 = vpop.xlane.xlu0 %134
  %136 = vadd.xlane.f32.xlu0 %v112
  %v137 = vpop.xlane.xlu0 %136
  %138 = vadd.xlane.f32.xlu0 %v113
  %v139 = vpop.xlane.xlu0 %138
  %140 = vadd.xlane.f32.xlu0 %v114
  %v141 = vpop.xlane.xlu0 %140
  %142 = vadd.xlane.f32.xlu0 %v115
  %v143 = vpop.xlane.xlu0 %142
  %144 = vadd.xlane.f32.xlu0 %v116
  %v145 = vpop.xlane.xlu0 %144
  %146 = vadd.xlane.f32.xlu0 %v117
  %v147 = vpop.xlane.xlu0 %146
  %148 = vadd.xlane.f32.xlu0 %v118
  %v149 = vpop.xlane.xlu0 %148
  %150 = vadd.xlane.f32.xlu0 %v119
  %v151 = vpop.xlane.xlu0 %150
  %v152 = vsub.f32 0.0, %v121
  %v153 = vsub.f32 0.0, %v123
  %v154 = vsub.f32 0.0, %v125
  %v155 = vsub.f32 0.0, %v127
  %v156 = vsub.f32 0.0, %v129
  %v157 = vsub.f32 0.0, %v131
  %v158 = vsub.f32 0.0, %v133
  %v159 = vsub.f32 0.0, %v135
  %v160 = vsub.f32 0.0, %v137
  %v161 = vsub.f32 0.0, %v139
  %v162 = vsub.f32 0.0, %v141
  %v163 = vsub.f32 0.0, %v143
  %v164 = vsub.f32 0.0, %v145
  %v165 = vsub.f32 0.0, %v147
  %v166 = vsub.f32 0.0, %v149
  %v167 = vsub.f32 0.0, %v151
  %vm168 = vcmask 7168
  %169 = vst.msk [vmem:[%s5] sm:$0xff] %vm168, %v152
  %170 = vst.msk [vmem:[%s5 + $0x8] sm:$0xff] %vm168, %v153
  %171 = vst.msk [vmem:[%s5 + $0x10] sm:$0xff] %vm168, %v154
  %172 = vst.msk [vmem:[%s5 + $0x18] sm:$0xff] %vm168, %v155
  %173 = vst.msk [vmem:[%s5 + $0x20] sm:$0xff] %vm168, %v156
  %174 = vst.msk [vmem:[%s5 + $0x28] sm:$0xff] %vm168, %v157
  %175 = vst.msk [vmem:[%s5 + $0x30] sm:$0xff] %vm168, %v158
  %176 = vst.msk [vmem:[%s5 + $0x38] sm:$0xff] %vm168, %v159
  %177 = vst.msk [vmem:[%s5 + $0x40] sm:$0xff] %vm168, %v160
  %178 = vst.msk [vmem:[%s5 + $0x48] sm:$0xff] %vm168, %v161
  %179 = vst.msk [vmem:[%s5 + $0x50] sm:$0xff] %vm168, %v162
  %180 = vst.msk [vmem:[%s5 + $0x58] sm:$0xff] %vm168, %v163
  %181 = vst.msk [vmem:[%s5 + $0x60] sm:$0xff] %vm168, %v164
  %182 = vst.msk [vmem:[%s5 + $0x68] sm:$0xff] %vm168, %v165
  %183 = vst.msk [vmem:[%s5 + $0x70] sm:$0xff] %vm168, %v166
  %184 = vst.msk [vmem:[%s5 + $0x78] sm:$0xff] %vm168, %v167
  // Predicated region
  $region18: #{alpha_loss.1} parent=0 // pred_check
    _
  $region19: #{alpha_loss.1} parent=0 // pred_check_branch
    %186 = sbr.rel (0) target = $region21
  $region20: #{alpha_loss.1} parent=0 // pred_region
    _
  $region21: #{alpha_loss.1} parent=0 // pred_fallthru
    _
  // Predicated region
  $region22: #{alpha_loss.1} parent=0 // pred_check
    _
  $region23: #{alpha_loss.1} parent=0 // pred_check_branch
    %188 = sbr.rel (0) target = $region25
  $region24: #{alpha_loss.1} parent=0 // pred_region
    _
  $region25: #{alpha_loss.1} parent=0 // pred_fallthru
    _
  // Predicated region
  $region26: #{alpha_loss.1} parent=0 // pred_check
    _
  $region27: #{alpha_loss.1} parent=0 // pred_check_branch
    %190 = sbr.rel (0) target = $region29
  $region28: #{alpha_loss.1} parent=0 // pred_region
    _
  $region29: #{alpha_loss.1} parent=0 // pred_fallthru
    _
  // Predicated region
  $region30: #{alpha_loss.1} parent=0 // pred_check
    _
  $region31: #{alpha_loss.1} parent=0 // pred_check_branch
    %192 = sbr.rel (0) target = $region33
  $region32: #{alpha_loss.1} parent=0 // pred_region
    _
  $region33: #{alpha_loss.1} parent=0 // pred_fallthru
    _

</llo_original>
